<compile_context>
chip_gen: v7x
topology: tpu7x:2x2x1
jax: 0.10.0
libtpu: 0.0.40
codegen_flags: <defaults>
</compile_context>

<pallas_src>
import math

import jax
import jax.numpy as jnp
from jax import lax
from jax.experimental import pallas as pl
from jax.experimental.pallas import tpu as pltpu  # noqa: F401  (kept for future scaled-up version)


def _mqa_kernel(n_query, embed_dim, x_ref, w_ref, b_ref, proj_ref, o_ref):
    HE = n_query * embed_dim

    x = x_ref[...]

    # Single fused input projection: [S, W] @ [W, H*E + 2E] + [1, H*E + 2E].
    # Lanes [0, HE) hold all-head Q (with 1/sqrt(E) pre-folded), [HE, HE+E)
    # hold K, [HE+E, HE+2E) hold V.
    y = jnp.dot(x, w_ref[...], preferred_element_type=jnp.float32) + b_ref[...]

    q_all = y[:, :HE]                                    # [S, H*E]
    k = y[:, HE:HE + embed_dim]                          # [S, E] shared
    v = y[:, HE + embed_dim:HE + 2 * embed_dim]          # [S, E] shared

    # Per-head attention (static, fully unrolled: n_query is tiny).
    zs = []
    for h in range(n_query):
        q_h = q_all[:, h * embed_dim:(h + 1) * embed_dim]          # [S, E]
        # Q_h @ K^T without materializing a transpose of K.
        s = lax.dot_general(q_h, k,
                            dimension_numbers=(((1,), (1,)), ((), ())),
                            preferred_element_type=jnp.float32)    # [S, S]
        m = jnp.max(s, axis=-1, keepdims=True)
        e = jnp.exp(s - m)
        p = e * pl.reciprocal(jnp.sum(e, axis=-1, keepdims=True), approx=True)
        zs.append(jnp.dot(p, v, preferred_element_type=jnp.float32))   # [S, E]

    # Concatenate heads along lanes -> [S, H*E], then one K=H*E MXU matmul
    # for the output projection.
    z_cat = jnp.concatenate(zs, axis=1)
    o_ref[...] = jnp.dot(z_cat, proj_ref[...],
                         preferred_element_type=jnp.float32).astype(o_ref.dtype)


def multi_query_attention(x, wq, bq, wk, bk, wv, bv, proj):
    """x: [S, W]; wq: [H, W, E]; bq: [H, 1, E]; wk/wv: [W, E]; bk/bv: [1, E];
    proj: [H*E, E] (same layout as the PyTorch parameter).  Returns [S, E]."""
    S, W = x.shape
    H, _, E = wq.shape
    HE = H * E
    # Matches `score /= torch.sqrt(self.dim_K)` with dim_K = embed_dim.
    scale = 1.0 / math.sqrt(float(E))

    # Parameter prep (layout plumbing, done once outside the kernel and
    # constant-folded / amortized under jit):
    #   * heads folded into the lane dimension,
    #   * softmax scale folded into the query weights + bias,
    #   * Q/K/V projections fused into one weight and one bias.
    wq_all = jnp.transpose(wq, (1, 0, 2)).reshape(W, HE) * scale   # [W, H*E]
    bq_all = bq.reshape(1, HE) * scale                             # [1, H*E]
    w_fused = jnp.concatenate([wq_all, wk, wv], axis=1)            # [W, H*E+2E]
    b_fused = jnp.concatenate([bq_all, bk, bv], axis=1)            # [1, H*E+2E]

    kernel = lambda *refs: _mqa_kernel(H, E, *refs)

    # No grid: whole (tiny) operands are placed in VMEM; the kernel body runs
    # once with no grid-loop bookkeeping.
    return pl.pallas_call(
        kernel,
        out_shape=jax.ShapeDtypeStruct((S, E), x.dtype),
    )(x, w_fused, b_fused, proj)


def reference_mqa(x, wq, bq, wk, bk, wv, bv, proj):
    """Pure-JAX reference mirroring the PyTorch forward."""
    E = wk.shape[-1]
    K = x @ wk + bk[0]
    V = x @ wv + bv[0]
    zs = []
    for h in range(wq.shape[0]):
        Q = x @ wq[h] + bq[h, 0]
        s = (Q @ K.T) / jnp.sqrt(jnp.float32(E))
        p = jax.nn.softmax(s, axis=-1)
        zs.append(p @ V)
    z_cat = jnp.concatenate(zs, axis=1)                    # [S, H*E]
    return z_cat @ proj                                    # [S, E]


if __name__ == "__main__":
    # Small, deterministic configuration (consistent with the module's forward).
    # n_query * embed_dim = 128 -> lane-dense Q / z_cat vregs.
    seq, word_size, embed_dim, n_query = 8, 64, 32, 4

    key = jax.random.PRNGKey(0)
    kx, kq, kbq, kk, kbk, kv, kbv, kp = jax.random.split(key, 8)

    x = jax.random.normal(kx, (seq, word_size), dtype=jnp.float32)

    # nn.Linear-style init (uniform in +-1/sqrt(fan_in)); only determinism and
    # shapes matter here.
    bound = 1.0 / math.sqrt(word_size)
    wq = jax.random.uniform(kq, (n_query, word_size, embed_dim),
                            minval=-bound, maxval=bound, dtype=jnp.float32)
    bq = jax.random.uniform(kbq, (n_query, 1, embed_dim),
                            minval=-bound, maxval=bound, dtype=jnp.float32)
    wk = jax.random.uniform(kk, (word_size, embed_dim),
                            minval=-bound, maxval=bound, dtype=jnp.float32)
    bk = jax.random.uniform(kbk, (1, embed_dim),
                            minval=-bound, maxval=bound, dtype=jnp.float32)
    wv = jax.random.uniform(kv, (word_size, embed_dim),
                            minval=-bound, maxval=bound, dtype=jnp.float32)
    bv = jax.random.uniform(kbv, (1, embed_dim),
                            minval=-bound, maxval=bound, dtype=jnp.float32)
    # proj: xavier_normal_ on shape (embed_dim * n_query, embed_dim), stored in
    # the same layout as the PyTorch parameter and applied as z_cat @ proj.
    xavier_std = math.sqrt(2.0 / (embed_dim * n_query + embed_dim))
    proj = (jax.random.normal(kp, (n_query * embed_dim, embed_dim),
                              dtype=jnp.float32) * xavier_std)

    out = multi_query_attention(x, wq, bq, wk, bk, wv, bv, proj)
    out = jax.block_until_ready(out)

    ref = reference_mqa(x, wq, bq, wk, bk, wv, bv, proj)
    assert out.shape == (seq, embed_dim)
    # Tolerance loosened slightly for the EUP approximate reciprocal.
    assert jnp.allclose(out, ref, atol=2e-3, rtol=2e-3), "mismatch vs reference"

    print("KERNEL_OK")
</pallas_src>

<mosaic_0001>
module attributes {stable_mosaic.version = 11 : i64} {
  func.func @_lambda_(%arg0: memref<8x64xf32, #tpu.memory_space<vmem>>, %arg1: memref<64x192xf32, #tpu.memory_space<vmem>>, %arg2: memref<1x192xf32, #tpu.memory_space<vmem>>, %arg3: memref<128x32xf32, #tpu.memory_space<vmem>>, %arg4: memref<8x32xf32, #tpu.memory_space<vmem>>) attributes {dimension_semantics = [], scalar_prefetch = 0 : i64, scratch_operands = 0 : i64, tpu.core_type = #tpu.core_type<tc>} {
    %c0 = arith.constant 0 : index
    %c0_0 = arith.constant 0 : index
    %0 = vector.load %arg0[%c0, %c0_0] : memref<8x64xf32, #tpu.memory_space<vmem>>, vector<8x64xf32>
    %c0_1 = arith.constant 0 : index
    %c0_2 = arith.constant 0 : index
    %1 = vector.load %arg1[%c0_1, %c0_2] : memref<64x192xf32, #tpu.memory_space<vmem>>, vector<64x192xf32>
    %cst = arith.constant dense<0.000000e+00> : vector<8x192xf32>
    %2 = tpu.matmul %0, %1, %cst {dimension_numbers = #tpu.dot_dimension_numbers<[1], [0], [0], [1], [0, 0, 1, 1], [], []>} : vector<8x64xf32>, vector<64x192xf32>, vector<8x192xf32> -> vector<8x192xf32>
    %c0_3 = arith.constant 0 : index
    %c0_4 = arith.constant 0 : index
    %3 = vector.load %arg2[%c0_3, %c0_4] : memref<1x192xf32, #tpu.memory_space<vmem>>, vector<1x192xf32>
    %4 = vector.broadcast %3 : vector<1x192xf32> to vector<8x192xf32>
    %5 = arith.addf %2, %4 : vector<8x192xf32>
    %6 = vector.extract_strided_slice %5 {offsets = [0, 0], sizes = [8, 128], strides = [1, 1]} : vector<8x192xf32> to vector<8x128xf32>
    %7 = vector.extract_strided_slice %5 {offsets = [0, 128], sizes = [8, 32], strides = [1, 1]} : vector<8x192xf32> to vector<8x32xf32>
    %8 = vector.extract_strided_slice %5 {offsets = [0, 160], sizes = [8, 32], strides = [1, 1]} : vector<8x192xf32> to vector<8x32xf32>
    %9 = vector.extract_strided_slice %6 {offsets = [0, 0], sizes = [8, 32], strides = [1, 1]} : vector<8x128xf32> to vector<8x32xf32>
    %cst_5 = arith.constant dense<0.000000e+00> : vector<8x8xf32>
    %10 = tpu.matmul %9, %7, %cst_5 {dimension_numbers = #tpu.dot_dimension_numbers<[1], [1], [0], [0], [0, 0, 1, 0], [], []>} : vector<8x32xf32>, vector<8x32xf32>, vector<8x8xf32> -> vector<8x8xf32>
    %cst_6 = arith.constant dense<0xFF800000> : vector<8xf32>
    %11 = vector.multi_reduction <maximumf>, %10, %cst_6 [1] : vector<8x8xf32> to vector<8xf32>
    %12 = vector.shape_cast %11 : vector<8xf32> to vector<8x1xf32>
    %13 = vector.broadcast %12 : vector<8x1xf32> to vector<8x8xf32>
    %14 = arith.subf %10, %13 : vector<8x8xf32>
    %15 = math.exp %14 : vector<8x8xf32>
    %cst_7 = arith.constant dense<0.000000e+00> : vector<8xf32>
    %16 = vector.multi_reduction <add>, %15, %cst_7 [1] : vector<8x8xf32> to vector<8xf32>
    %17 = vector.shape_cast %16 : vector<8xf32> to vector<8x1xf32>
    %18 = tpu.reciprocal %17 {approx = true} : vector<8x1xf32> -> vector<8x1xf32>
    %19 = vector.broadcast %18 : vector<8x1xf32> to vector<8x8xf32>
    %20 = arith.mulf %15, %19 : vector<8x8xf32>
    %cst_8 = arith.constant dense<0.000000e+00> : vector<8x32xf32>
    %21 = tpu.matmul %20, %8, %cst_8 {dimension_numbers = #tpu.dot_dimension_numbers<[1], [0], [0], [1], [0, 0, 1, 1], [], []>} : vector<8x8xf32>, vector<8x32xf32>, vector<8x32xf32> -> vector<8x32xf32>
    %22 = vector.extract_strided_slice %6 {offsets = [0, 32], sizes = [8, 32], strides = [1, 1]} : vector<8x128xf32> to vector<8x32xf32>
    %cst_9 = arith.constant dense<0.000000e+00> : vector<8x8xf32>
    %23 = tpu.matmul %22, %7, %cst_9 {dimension_numbers = #tpu.dot_dimension_numbers<[1], [1], [0], [0], [0, 0, 1, 0], [], []>} : vector<8x32xf32>, vector<8x32xf32>, vector<8x8xf32> -> vector<8x8xf32>
    %cst_10 = arith.constant dense<0xFF800000> : vector<8xf32>
    %24 = vector.multi_reduction <maximumf>, %23, %cst_10 [1] : vector<8x8xf32> to vector<8xf32>
    %25 = vector.shape_cast %24 : vector<8xf32> to vector<8x1xf32>
    %26 = vector.broadcast %25 : vector<8x1xf32> to vector<8x8xf32>
    %27 = arith.subf %23, %26 : vector<8x8xf32>
    %28 = math.exp %27 : vector<8x8xf32>
    %cst_11 = arith.constant dense<0.000000e+00> : vector<8xf32>
    %29 = vector.multi_reduction <add>, %28, %cst_11 [1] : vector<8x8xf32> to vector<8xf32>
    %30 = vector.shape_cast %29 : vector<8xf32> to vector<8x1xf32>
    %31 = tpu.reciprocal %30 {approx = true} : vector<8x1xf32> -> vector<8x1xf32>
    %32 = vector.broadcast %31 : vector<8x1xf32> to vector<8x8xf32>
    %33 = arith.mulf %28, %32 : vector<8x8xf32>
    %cst_12 = arith.constant dense<0.000000e+00> : vector<8x32xf32>
    %34 = tpu.matmul %33, %8, %cst_12 {dimension_numbers = #tpu.dot_dimension_numbers<[1], [0], [0], [1], [0, 0, 1, 1], [], []>} : vector<8x8xf32>, vector<8x32xf32>, vector<8x32xf32> -> vector<8x32xf32>
    %35 = vector.extract_strided_slice %6 {offsets = [0, 64], sizes = [8, 32], strides = [1, 1]} : vector<8x128xf32> to vector<8x32xf32>
    %cst_13 = arith.constant dense<0.000000e+00> : vector<8x8xf32>
    %36 = tpu.matmul %35, %7, %cst_13 {dimension_numbers = #tpu.dot_dimension_numbers<[1], [1], [0], [0], [0, 0, 1, 0], [], []>} : vector<8x32xf32>, vector<8x32xf32>, vector<8x8xf32> -> vector<8x8xf32>
    %cst_14 = arith.constant dense<0xFF800000> : vector<8xf32>
    %37 = vector.multi_reduction <maximumf>, %36, %cst_14 [1] : vector<8x8xf32> to vector<8xf32>
    %38 = vector.shape_cast %37 : vector<8xf32> to vector<8x1xf32>
    %39 = vector.broadcast %38 : vector<8x1xf32> to vector<8x8xf32>
    %40 = arith.subf %36, %39 : vector<8x8xf32>
    %41 = math.exp %40 : vector<8x8xf32>
    %cst_15 = arith.constant dense<0.000000e+00> : vector<8xf32>
    %42 = vector.multi_reduction <add>, %41, %cst_15 [1] : vector<8x8xf32> to vector<8xf32>
    %43 = vector.shape_cast %42 : vector<8xf32> to vector<8x1xf32>
    %44 = tpu.reciprocal %43 {approx = true} : vector<8x1xf32> -> vector<8x1xf32>
    %45 = vector.broadcast %44 : vector<8x1xf32> to vector<8x8xf32>
    %46 = arith.mulf %41, %45 : vector<8x8xf32>
    %cst_16 = arith.constant dense<0.000000e+00> : vector<8x32xf32>
    %47 = tpu.matmul %46, %8, %cst_16 {dimension_numbers = #tpu.dot_dimension_numbers<[1], [0], [0], [1], [0, 0, 1, 1], [], []>} : vector<8x8xf32>, vector<8x32xf32>, vector<8x32xf32> -> vector<8x32xf32>
    %48 = vector.extract_strided_slice %6 {offsets = [0, 96], sizes = [8, 32], strides = [1, 1]} : vector<8x128xf32> to vector<8x32xf32>
    %cst_17 = arith.constant dense<0.000000e+00> : vector<8x8xf32>
    %49 = tpu.matmul %48, %7, %cst_17 {dimension_numbers = #tpu.dot_dimension_numbers<[1], [1], [0], [0], [0, 0, 1, 0], [], []>} : vector<8x32xf32>, vector<8x32xf32>, vector<8x8xf32> -> vector<8x8xf32>
    %cst_18 = arith.constant dense<0xFF800000> : vector<8xf32>
    %50 = vector.multi_reduction <maximumf>, %49, %cst_18 [1] : vector<8x8xf32> to vector<8xf32>
    %51 = vector.shape_cast %50 : vector<8xf32> to vector<8x1xf32>
    %52 = vector.broadcast %51 : vector<8x1xf32> to vector<8x8xf32>
    %53 = arith.subf %49, %52 : vector<8x8xf32>
    %54 = math.exp %53 : vector<8x8xf32>
    %cst_19 = arith.constant dense<0.000000e+00> : vector<8xf32>
    %55 = vector.multi_reduction <add>, %54, %cst_19 [1] : vector<8x8xf32> to vector<8xf32>
    %56 = vector.shape_cast %55 : vector<8xf32> to vector<8x1xf32>
    %57 = tpu.reciprocal %56 {approx = true} : vector<8x1xf32> -> vector<8x1xf32>
    %58 = vector.broadcast %57 : vector<8x1xf32> to vector<8x8xf32>
    %59 = arith.mulf %54, %58 : vector<8x8xf32>
    %cst_20 = arith.constant dense<0.000000e+00> : vector<8x32xf32>
    %60 = tpu.matmul %59, %8, %cst_20 {dimension_numbers = #tpu.dot_dimension_numbers<[1], [0], [0], [1], [0, 0, 1, 1], [], []>} : vector<8x8xf32>, vector<8x32xf32>, vector<8x32xf32> -> vector<8x32xf32>
    %61 = tpu.concatenate %21, %34, %47, %60 in 1 : vector<8x32xf32>, vector<8x32xf32>, vector<8x32xf32>, vector<8x32xf32> -> vector<8x128xf32>
    %c0_21 = arith.constant 0 : index
    %c0_22 = arith.constant 0 : index
    %62 = vector.load %arg3[%c0_21, %c0_22] : memref<128x32xf32, #tpu.memory_space<vmem>>, vector<128x32xf32>
    %cst_23 = arith.constant dense<0.000000e+00> : vector<8x32xf32>
    %63 = tpu.matmul %61, %62, %cst_23 {dimension_numbers = #tpu.dot_dimension_numbers<[1], [0], [0], [1], [0, 0, 1, 1], [], []>} : vector<8x128xf32>, vector<128x32xf32>, vector<8x32xf32> -> vector<8x32xf32>
    %c0_24 = arith.constant 0 : index
    %c0_25 = arith.constant 0 : index
    %64 = vector.load %arg4[%c0_24, %c0_25] : memref<8x32xf32, #tpu.memory_space<vmem>>, vector<8x32xf32>
    tpu.vector_store %arg4[%c0_24, %c0_25], %63 {strides = array<i32>} : memref<8x32xf32, #tpu.memory_space<vmem>>, vector<8x32xf32>,
    return
  }
}

</mosaic_0001>

<llo_original>
// kernel: tpu_custom_call.1
$region0: #{tpu_custom_call.1}
  #allocation0 [shape = 'u32[]', space=smem, size = 0x4, offset = 0x4, fixed_abs, tag = 'smem constant byte address 0x4 - core index']
  #allocation1 [shape = 'u32[144,128]{1,0:T(1,128)}', space=vmem, size = 0x12000, scoped, tag = 'internal scratch']
  %s0 = inlined_call_operand.vmem [shape: f32[8,64], index: 0, kind: input, shape index: {}]
  %s1 = inlined_call_operand.vmem [shape: f32[64,192], index: 1, kind: input, shape index: {}]
  %s2 = inlined_call_operand.vmem [shape: f32[1,192], index: 2, kind: input, shape index: {}]
  %s3 = inlined_call_operand.vmem [shape: f32[128,32], index: 3, kind: input, shape index: {}]
  %s4 = inlined_call_operand.hbm [shape: f32[8,32], index: 4, kind: output, shape index: {}]
  %s5 = sld [smem:[#allocation0]]
  $region26: #{tpu_custom_call.1} parent=0
    _
  %s7 = ssub.s32 1, %s5
  %s8 = scalar_select 0, %s7, %s5
  $region1: #{tpu_custom_call.1} parent=0
    #allocation2 [shape = 'u8[4096]{0}', space=vmem, size = 0x1000, scoped, tag = 'output window, operand 0, single buffered']
    #allocation3 [shape = 's32[1]{0}', space=sflag, size = 0x4, scoped, tag = 'scoped memory for tpu_custom_call.1']
    %9 = vsyncpa [#allocation3], 0
    // Predicated region
    $region2: #{tpu_custom_call.1} parent=1 // pred_check
      _
    $region3: #{tpu_custom_call.1} parent=1 // pred_check_branch
      %11 = sbr.rel (0) target = $region5
    $region4: #{tpu_custom_call.1} parent=1 // pred_region
      _
    $region5: #{tpu_custom_call.1} parent=1 // pred_fallthru
      _
    // Predicated region
    $region6: #{tpu_custom_call.1} parent=1 // pred_check
      _
    $region7: #{tpu_custom_call.1} parent=1 // pred_check_branch
      %13 = sbr.rel (0) target = $region9
    $region8: #{tpu_custom_call.1} parent=1 // pred_region
      _
    $region9: #{tpu_custom_call.1} parent=1 // pred_fallthru
      _
    // Predicated region
    $region10: #{tpu_custom_call.1} parent=1 // pred_check
      _
    $region11: #{tpu_custom_call.1} parent=1 // pred_check_branch
      %15 = sbr.rel (0) target = $region13
    $region12: #{tpu_custom_call.1} parent=1 // pred_region
      _
    $region13: #{tpu_custom_call.1} parent=1 // pred_fallthru
      _
    // Predicated region
    $region14: #{tpu_custom_call.1} parent=1 // pred_check
      _
    $region15: #{tpu_custom_call.1} parent=1 // pred_check_branch
      %17 = sbr.rel (0) target = $region17
    $region16: #{tpu_custom_call.1} parent=1 // pred_region
      _
    $region17: #{tpu_custom_call.1} parent=1 // pred_fallthru
      _
    %v18 = vld [vmem:[%s0] sm:$0xff]
    %v19 = vld [vmem:[%s1] sm:$0xff]
    %v20 = vld [vmem:[%s1 + $0x8] sm:$0xff]
    %v21 = vld [vmem:[%s1 + $0x10] sm:$0xff]
    %v22 = vld [vmem:[%s1 + $0x18] sm:$0xff]
    %v23 = vld [vmem:[%s1 + $0x20] sm:$0xff]
    %v24 = vld [vmem:[%s1 + $0x28] sm:$0xff]
    %v25 = vld [vmem:[%s1 + $0x30] sm:$0xff]
    %v26 = vld [vmem:[%s1 + $0x38] sm:$0xff]
    %v27 = vld [vmem:[%s1 + $0x40] sm:$0xff]
    %v28 = vld [vmem:[%s1 + $0x48] sm:$0xff]
    %v29 = vld [vmem:[%s1 + $0x50] sm:$0xff]
    %v30 = vld [vmem:[%s1 + $0x58] sm:$0xff]
    %v31 = vld [vmem:[%s1 + $0x60] sm:$0xff]
    %v32 = vld [vmem:[%s1 + $0x68] sm:$0xff]
    %v33 = vld [vmem:[%s1 + $0x70] sm:$0xff]
    %v34 = vld [vmem:[%s1 + $0x78] sm:$0xff]
    %v35 = vld [vmem:[%s2] sm:$0x3]
    %v37 = vlaneseq
    %v38 = vshrl.u32 %v37, 7
    %v39 = vsub.s32 0, %v38
    %v40 = vrot.slane %v35, %v39
    %v41 = vlaneseq
    %v42 = vshrl.u32 %v41, 7
    %v43 = vsub.s32 1, %v42
    %v44 = vrot.slane %v35, %v43
    %vm47 = vcmask 523264
    %v49 = vsel %vm47, %v18, 0
    %51 = vmatprep.subr.mxu0 %v20
    %52 = vmatpush1.msra.mxu0 %v19
    %53 = vmatprep.subr.mxu0 %v22
    %54 = vmatpush1.msra.mxu0 %v21
    %55 = vmatprep.subr.mxu0 %v24
    %56 = vmatpush1.msra.mxu0 %v23
    %57 = vmatprep.subr.mxu0 %v26
    %58 = vmatpush1.msra.mxu0 %v25
    %59 = vmatprep.subr.mxu0 %v28
    %60 = vmatpush1.msra.mxu0 %v27
    %61 = vmatprep.subr.mxu0 %v30
    %62 = vmatpush1.msra.mxu0 %v29
    %63 = vmatprep.subr.mxu0 %v32
    %64 = vmatpush1.msra.mxu0 %v31
    %65 = vmatprep.subr.mxu0 %v34
    %66 = vmatpush1.msra.mxu0 %v33
    %67 = vmatprep.subr.mxu0 0.0
    %68 = vmatpush1.msra.mxu0 0.0
    %69 = vmatprep.subr.mxu0 0.0
    %70 = vmatpush1.msra.mxu0 0.0
    %71 = vmatprep.subr.mxu0 0.0
    %72 = vmatpush1.msra.mxu0 0.0
    %73 = vmatprep.subr.mxu0 0.0
    %74 = vmatpush1.msra.mxu0 0.0
    %75 = vmatprep.subr.mxu0 0.0
    %76 = vmatpush1.msra.mxu0 0.0
    %77 = vmatprep.subr.mxu0 0.0
    %78 = vmatpush1.msra.mxu0 0.0
    %79 = vmatprep.subr.mxu0 0.0
    %80 = vmatpush1.msra.mxu0 0.0
    %81 = vmatprep.subr.mxu0 0.0
    %82 = vmatpush1.msra.mxu0 0.0
    %83 = vmatprep.subr.mxu0 0.0
    %84 = vmatpush1.msra.mxu0 0.0
    %85 = vmatprep.subr.mxu0 0.0
    %86 = vmatpush1.msra.mxu0 0.0
    %87 = vmatprep.subr.mxu0 0.0
    %88 = vmatpush1.msra.mxu0 0.0
    %89 = vmatprep.subr.mxu0 0.0
    %90 = vmatpush1.msra.mxu0 0.0
    %91 = vmatprep.subr.mxu0 0.0
    %92 = vmatpush1.msra.mxu0 0.0
    %93 = vmatprep.subr.mxu0 0.0
    %94 = vmatpush1.msra.mxu0 0.0
    %95 = vmatprep.subr.mxu0 0.0
    %96 = vmatpush1.msra.mxu0 0.0
    %97 = vmatprep.subr.mxu0 0.0
    %98 = vmatpush1.msra.mxu0 0.0
    %99 = vmatprep.subr.mxu0 0.0
    %100 = vmatpush1.msra.mxu0 0.0
    %101 = vmatprep.subr.mxu0 0.0
    %102 = vmatpush1.msra.mxu0 0.0
    %103 = vmatprep.subr.mxu0 0.0
    %104 = vmatpush1.msra.mxu0 0.0
    %105 = vmatprep.subr.mxu0 0.0
    %106 = vmatpush1.msra.mxu0 0.0
    %107 = vmatprep.subr.mxu0 0.0
    %108 = vmatpush1.msra.mxu0 0.0
    %109 = vmatprep.subr.mxu0 0.0
    %110 = vmatpush1.msra.mxu0 0.0
    %111 = vmatprep.subr.mxu0 0.0
    %112 = vmatpush1.msra.mxu0 0.0
    %113 = vmatprep.subr.mxu0 0.0
    %114 = vmatpush1.msra.mxu0 0.0
    %115 = vmatprep.mubr.f32.mxu0 0.0
    %116 = vmatmul.mubr.f32.gmra.mrb[0].mxu0 %v49
    %v117 = vpop.f32.mrb[0].mxu0
    %v118 = vadd.f32 %v40, %v117
    %v119 = vpop.f32.mrb[0].mxu0
    %v120 = vadd.f32 %v44, %v119
    %121 = vdwg.mxu0
    %vm122 = vcmask 261120
    %v124 = vsel %vm122, %v118, 0
    %v127 = vsel %vm122, %v120, 0
    %129 = vmatprep.subr.mxu0 0.0
    %130 = vmatpush1.xpose.msra.mxu0 %v127
    %131 = vmatprep.subr.mxu0 0.0
    %132 = vmatpush1.xpose.msra.mxu0 0.0
    %133 = vmatprep.subr.mxu0 0.0
    %134 = vmatpush1.xpose.msra.mxu0 0.0
    %135 = vmatprep.subr.mxu0 0.0
    %136 = vmatpush1.xpose.msra.mxu0 0.0
    %137 = vmatprep.subr.mxu0 0.0
    %138 = vmatpush1.xpose.msra.mxu0 0.0
    %139 = vmatprep.subr.mxu0 0.0
    %140 = vmatpush1.xpose.msra.mxu0 0.0
    %141 = vmatprep.subr.mxu0 0.0
    %142 = vmatpush1.xpose.msra.mxu0 0.0
    %143 = vmatprep.subr.mxu0 0.0
    %144 = vmatpush1.xpose.msra.mxu0 0.0
    %145 = vmatprep.subr.mxu0 0.0
    %146 = vmatpush1.xpose.msra.mxu0 0.0
    %147 = vmatprep.subr.mxu0 0.0
    %148 = vmatpush1.xpose.msra.mxu0 0.0
    %149 = vmatprep.subr.mxu0 0.0
    %150 = vmatpush1.xpose.msra.mxu0 0.0
    %151 = vmatprep.subr.mxu0 0.0
    %152 = vmatpush1.xpose.msra.mxu0 0.0
    %153 = vmatprep.subr.mxu0 0.0
    %154 = vmatpush1.xpose.msra.mxu0 0.0
    %155 = vmatprep.subr.mxu0 0.0
    %156 = vmatpush1.xpose.msra.mxu0 0.0
    %157 = vmatprep.subr.mxu0 0.0
    %158 = vmatpush1.xpose.msra.mxu0 0.0
    %159 = vmatprep.subr.mxu0 0.0
    %160 = vmatpush1.xpose.msra.mxu0 0.0
    %161 = vmatprep.subr.mxu0 0.0
    %162 = vmatpush1.xpose.msra.mxu0 0.0
    %163 = vmatprep.subr.mxu0 0.0
    %164 = vmatpush1.xpose.msra.mxu0 0.0
    %165 = vmatprep.subr.mxu0 0.0
    %166 = vmatpush1.xpose.msra.mxu0 0.0
    %167 = vmatprep.subr.mxu0 0.0
    %168 = vmatpush1.xpose.msra.mxu0 0.0
    %169 = vmatprep.subr.mxu0 0.0
    %170 = vmatpush1.xpose.msra.mxu0 0.0
    %171 = vmatprep.subr.mxu0 0.0
    %172 = vmatpush1.xpose.msra.mxu0 0.0
    %173 = vmatprep.subr.mxu0 0.0
    %174 = vmatpush1.xpose.msra.mxu0 0.0
    %175 = vmatprep.subr.mxu0 0.0
    %176 = vmatpush1.xpose.msra.mxu0 0.0
    %177 = vmatprep.subr.mxu0 0.0
    %178 = vmatpush1.xpose.msra.mxu0 0.0
    %179 = vmatprep.subr.mxu0 0.0
    %180 = vmatpush1.xpose.msra.mxu0 0.0
    %181 = vmatprep.subr.mxu0 0.0
    %182 = vmatpush1.xpose.msra.mxu0 0.0
    %183 = vmatprep.subr.mxu0 0.0
    %184 = vmatpush1.xpose.msra.mxu0 0.0
    %185 = vmatprep.subr.mxu0 0.0
    %186 = vmatpush1.xpose.msra.mxu0 0.0
    %187 = vmatprep.subr.mxu0 0.0
    %188 = vmatpush1.xpose.msra.mxu0 0.0
    %189 = vmatprep.subr.mxu0 0.0
    %190 = vmatpush1.xpose.msra.mxu0 0.0
    %191 = vmatprep.subr.mxu0 0.0
    %192 = vmatpush1.xpose.msra.mxu0 0.0
    %193 = vmatprep.mubr.f32.mxu0 0.0
    %194 = vmatmul.mubr.f32.gmra.mrb[0].mxu0 %v124
    %v195 = vpop.f32.mrb[0].mxu0
    %v196 = vadd.f32 0.0, %v195
    %v197 = vpop.f32.mrb[0].mxu0
    %198 = vdwg.mxu0
    %vm199 = vcmask 64512
    %v200 = vsel %vm199, %v196, -inf
    %201 = vmax.xlane.f32.xlu0 %v200
    %v202 = vpop.xlane.xlu0 %201
    %v203 = vsub.f32 %v196, %v202
    %v204 = vmul.f32 %v203, 1.442695
    %v205 = vpow.pop %v204
    %v206 = vsel %vm199, %v205, 0.0
    %207 = vadd.xlane.f32.xlu0 %v206
    %v208 = vpop.xlane.xlu0 %207
    %v209 = vrcp.pop %v208
    %v210 = vmul.f32 %v205, %v209
    %211 = vrot.lane.b32.xlu0 %v120, 96
    %v212 = vpop.permute.xlu0 %211
    %v215 = vsel %vm199, %v210, 0
    %217 = vmatprep.subr.mxu0 0.0
    %218 = vmatpush1.msra.mxu0 %v212
    %219 = vmatprep.subr.mxu0 0.0
    %220 = vmatpush1.msra.mxu0 0.0
    %221 = vmatprep.subr.mxu0 0.0
    %222 = vmatpush1.msra.mxu0 0.0
    %223 = vmatprep.subr.mxu0 0.0
    %224 = vmatpush1.msra.mxu0 0.0
    %225 = vmatprep.subr.mxu0 0.0
    %226 = vmatpush1.msra.mxu0 0.0
    %227 = vmatprep.subr.mxu0 0.0
    %228 = vmatpush1.msra.mxu0 0.0
    %229 = vmatprep.subr.mxu0 0.0
    %230 = vmatpush1.msra.mxu0 0.0
    %231 = vmatprep.subr.mxu0 0.0
    %232 = vmatpush1.msra.mxu0 0.0
    %233 = vmatprep.subr.mxu0 0.0
    %234 = vmatpush1.msra.mxu0 0.0
    %235 = vmatprep.subr.mxu0 0.0
    %236 = vmatpush1.msra.mxu0 0.0
    %237 = vmatprep.subr.mxu0 0.0
    %238 = vmatpush1.msra.mxu0 0.0
    %239 = vmatprep.subr.mxu0 0.0
    %240 = vmatpush1.msra.mxu0 0.0
    %241 = vmatprep.subr.mxu0 0.0
    %242 = vmatpush1.msra.mxu0 0.0
    %243 = vmatprep.subr.mxu0 0.0
    %244 = vmatpush1.msra.mxu0 0.0
    %245 = vmatprep.subr.mxu0 0.0
    %246 = vmatpush1.msra.mxu0 0.0
    %247 = vmatprep.subr.mxu0 0.0
    %248 = vmatpush1.msra.mxu0 0.0
    %249 = vmatprep.subr.mxu0 0.0
    %250 = vmatpush1.msra.mxu0 0.0
    %251 = vmatprep.subr.mxu0 0.0
    %252 = vmatpush1.msra.mxu0 0.0
    %253 = vmatprep.subr.mxu0 0.0
    %254 = vmatpush1.msra.mxu0 0.0
    %255 = vmatprep.subr.mxu0 0.0
    %256 = vmatpush1.msra.mxu0 0.0
    %257 = vmatprep.subr.mxu0 0.0
    %258 = vmatpush1.msra.mxu0 0.0
    %259 = vmatprep.subr.mxu0 0.0
    %260 = vmatpush1.msra.mxu0 0.0
    %261 = vmatprep.subr.mxu0 0.0
    %262 = vmatpush1.msra.mxu0 0.0
    %263 = vmatprep.subr.mxu0 0.0
    %264 = vmatpush1.msra.mxu0 0.0
    %265 = vmatprep.subr.mxu0 0.0
    %266 = vmatpush1.msra.mxu0 0.0
    %267 = vmatprep.subr.mxu0 0.0
    %268 = vmatpush1.msra.mxu0 0.0
    %269 = vmatprep.subr.mxu0 0.0
    %270 = vmatpush1.msra.mxu0 0.0
    %271 = vmatprep.subr.mxu0 0.0
    %272 = vmatpush1.msra.mxu0 0.0
    %273 = vmatprep.subr.mxu0 0.0
    %274 = vmatpush1.msra.mxu0 0.0
    %275 = vmatprep.subr.mxu0 0.0
    %276 = vmatpush1.msra.mxu0 0.0
    %277 = vmatprep.subr.mxu0 0.0
    %278 = vmatpush1.msra.mxu0 0.0
    %279 = vmatprep.subr.mxu0 0.0
    %280 = vmatpush1.msra.mxu0 0.0
    %281 = vmatprep.mubr.f32.mxu0 0.0
    %282 = vmatmul.mubr.f32.gmra.mrb[0].mxu0 %v215
    %v283 = vpop.f32.mrb[0].mxu0
    %v284 = vadd.f32 0.0, %v283
    %v285 = vpop.f32.mrb[0].mxu0
    %286 = vdwg.mxu0
    %287 = vrot.lane.b32.xlu0 %v118, 96
    %v288 = vpop.permute.xlu0 %287
    %v289 = vsel %vm122, %v288, 0
    %291 = vmatprep.subr.mxu0 0.0
    %292 = vmatpush1.xpose.msra.mxu0 %v127
    %293 = vmatprep.subr.mxu0 0.0
    %294 = vmatpush1.xpose.msra.mxu0 0.0
    %295 = vmatprep.subr.mxu0 0.0
    %296 = vmatpush1.xpose.msra.mxu0 0.0
    %297 = vmatprep.subr.mxu0 0.0
    %298 = vmatpush1.xpose.msra.mxu0 0.0
    %299 = vmatprep.subr.mxu0 0.0
    %300 = vmatpush1.xpose.msra.mxu0 0.0
    %301 = vmatprep.subr.mxu0 0.0
    %302 = vmatpush1.xpose.msra.mxu0 0.0
    %303 = vmatprep.subr.mxu0 0.0
    %304 = vmatpush1.xpose.msra.mxu0 0.0
    %305 = vmatprep.subr.mxu0 0.0
    %306 = vmatpush1.xpose.msra.mxu0 0.0
    %307 = vmatprep.subr.mxu0 0.0
    %308 = vmatpush1.xpose.msra.mxu0 0.0
    %309 = vmatprep.subr.mxu0 0.0
    %310 = vmatpush1.xpose.msra.mxu0 0.0
    %311 = vmatprep.subr.mxu0 0.0
    %312 = vmatpush1.xpose.msra.mxu0 0.0
    %313 = vmatprep.subr.mxu0 0.0
    %314 = vmatpush1.xpose.msra.mxu0 0.0
    %315 = vmatprep.subr.mxu0 0.0
    %316 = vmatpush1.xpose.msra.mxu0 0.0
    %317 = vmatprep.subr.mxu0 0.0
    %318 = vmatpush1.xpose.msra.mxu0 0.0
    %319 = vmatprep.subr.mxu0 0.0
    %320 = vmatpush1.xpose.msra.mxu0 0.0
    %321 = vmatprep.subr.mxu0 0.0
    %322 = vmatpush1.xpose.msra.mxu0 0.0
    %323 = vmatprep.subr.mxu0 0.0
    %324 = vmatpush1.xpose.msra.mxu0 0.0
    %325 = vmatprep.subr.mxu0 0.0
    %326 = vmatpush1.xpose.msra.mxu0 0.0
    %327 = vmatprep.subr.mxu0 0.0
    %328 = vmatpush1.xpose.msra.mxu0 0.0
    %329 = vmatprep.subr.mxu0 0.0
    %330 = vmatpush1.xpose.msra.mxu0 0.0
    %331 = vmatprep.subr.mxu0 0.0
    %332 = vmatpush1.xpose.msra.mxu0 0.0
    %333 = vmatprep.subr.mxu0 0.0
    %334 = vmatpush1.xpose.msra.mxu0 0.0
    %335 = vmatprep.subr.mxu0 0.0
    %336 = vmatpush1.xpose.msra.mxu0 0.0
    %337 = vmatprep.subr.mxu0 0.0
    %338 = vmatpush1.xpose.msra.mxu0 0.0
    %339 = vmatprep.subr.mxu0 0.0
    %340 = vmatpush1.xpose.msra.mxu0 0.0
    %341 = vmatprep.subr.mxu0 0.0
    %342 = vmatpush1.xpose.msra.mxu0 0.0
    %343 = vmatprep.subr.mxu0 0.0
    %344 = vmatpush1.xpose.msra.mxu0 0.0
    %345 = vmatprep.subr.mxu0 0.0
    %346 = vmatpush1.xpose.msra.mxu0 0.0
    %347 = vmatprep.subr.mxu0 0.0
    %348 = vmatpush1.xpose.msra.mxu0 0.0
    %349 = vmatprep.subr.mxu0 0.0
    %350 = vmatpush1.xpose.msra.mxu0 0.0
    %351 = vmatprep.subr.mxu0 0.0
    %352 = vmatpush1.xpose.msra.mxu0 0.0
    %353 = vmatprep.subr.mxu0 0.0
    %354 = vmatpush1.xpose.msra.mxu0 0.0
    %355 = vmatprep.mubr.f32.mxu0 0.0
    %356 = vmatmul.mubr.f32.gmra.mrb[0].mxu0 %v289
    %v357 = vpop.f32.mrb[0].mxu0
    %v358 = vadd.f32 0.0, %v357
    %v359 = vpop.f32.mrb[0].mxu0
    %360 = vdwg.mxu0
    %v361 = vsel %vm199, %v358, -inf
    %362 = vmax.xlane.f32.xlu0 %v361
    %v363 = vpop.xlane.xlu0 %362
    %v364 = vsub.f32 %v358, %v363
    %v365 = vmul.f32 %v364, 1.442695
    %v366 = vpow.pop %v365
    %v367 = vsel %vm199, %v366, 0.0
    %368 = vadd.xlane.f32.xlu0 %v367
    %v369 = vpop.xlane.xlu0 %368
    %v370 = vrcp.pop %v369
    %v371 = vmul.f32 %v366, %v370
    %v373 = vsel %vm199, %v371, 0
    %375 = vmatprep.subr.mxu0 0.0
    %376 = vmatpush1.msra.mxu0 %v212
    %377 = vmatprep.subr.mxu0 0.0
    %378 = vmatpush1.msra.mxu0 0.0
    %379 = vmatprep.subr.mxu0 0.0
    %380 = vmatpush1.msra.mxu0 0.0
    %381 = vmatprep.subr.mxu0 0.0
    %382 = vmatpush1.msra.mxu0 0.0
    %383 = vmatprep.subr.mxu0 0.0
    %384 = vmatpush1.msra.mxu0 0.0
    %385 = vmatprep.subr.mxu0 0.0
    %386 = vmatpush1.msra.mxu0 0.0
    %387 = vmatprep.subr.mxu0 0.0
    %388 = vmatpush1.msra.mxu0 0.0
    %389 = vmatprep.subr.mxu0 0.0
    %390 = vmatpush1.msra.mxu0 0.0
    %391 = vmatprep.subr.mxu0 0.0
    %392 = vmatpush1.msra.mxu0 0.0
    %393 = vmatprep.subr.mxu0 0.0
    %394 = vmatpush1.msra.mxu0 0.0
    %395 = vmatprep.subr.mxu0 0.0
    %396 = vmatpush1.msra.mxu0 0.0
    %397 = vmatprep.subr.mxu0 0.0
    %398 = vmatpush1.msra.mxu0 0.0
    %399 = vmatprep.subr.mxu0 0.0
    %400 = vmatpush1.msra.mxu0 0.0
    %401 = vmatprep.subr.mxu0 0.0
    %402 = vmatpush1.msra.mxu0 0.0
    %403 = vmatprep.subr.mxu0 0.0
    %404 = vmatpush1.msra.mxu0 0.0
    %405 = vmatprep.subr.mxu0 0.0
    %406 = vmatpush1.msra.mxu0 0.0
    %407 = vmatprep.subr.mxu0 0.0
    %408 = vmatpush1.msra.mxu0 0.0
    %409 = vmatprep.subr.mxu0 0.0
    %410 = vmatpush1.msra.mxu0 0.0
    %411 = vmatprep.subr.mxu0 0.0
    %412 = vmatpush1.msra.mxu0 0.0
    %413 = vmatprep.subr.mxu0 0.0
    %414 = vmatpush1.msra.mxu0 0.0
    %415 = vmatprep.subr.mxu0 0.0
    %416 = vmatpush1.msra.mxu0 0.0
    %417 = vmatprep.subr.mxu0 0.0
    %418 = vmatpush1.msra.mxu0 0.0
    %419 = vmatprep.subr.mxu0 0.0
    %420 = vmatpush1.msra.mxu0 0.0
    %421 = vmatprep.subr.mxu0 0.0
    %422 = vmatpush1.msra.mxu0 0.0
    %423 = vmatprep.subr.mxu0 0.0
    %424 = vmatpush1.msra.mxu0 0.0
    %425 = vmatprep.subr.mxu0 0.0
    %426 = vmatpush1.msra.mxu0 0.0
    %427 = vmatprep.subr.mxu0 0.0
    %428 = vmatpush1.msra.mxu0 0.0
    %429 = vmatprep.subr.mxu0 0.0
    %430 = vmatpush1.msra.mxu0 0.0
    %431 = vmatprep.subr.mxu0 0.0
    %432 = vmatpush1.msra.mxu0 0.0
    %433 = vmatprep.subr.mxu0 0.0
    %434 = vmatpush1.msra.mxu0 0.0
    %435 = vmatprep.subr.mxu0 0.0
    %436 = vmatpush1.msra.mxu0 0.0
    %437 = vmatprep.subr.mxu0 0.0
    %438 = vmatpush1.msra.mxu0 0.0
    %439 = vmatprep.mubr.f32.mxu0 0.0
    %440 = vmatmul.mubr.f32.gmra.mrb[0].mxu0 %v373
    %v441 = vpop.f32.mrb[0].mxu0
    %v442 = vadd.f32 0.0, %v441
    %v443 = vpop.f32.mrb[0].mxu0
    %444 = vdwg.mxu0
    %445 = vrot.lane.b32.xlu0 %v118, 64
    %v446 = vpop.permute.xlu0 %445
    %v447 = vsel %vm122, %v446, 0
    %449 = vmatprep.subr.mxu0 0.0
    %450 = vmatpush1.xpose.msra.mxu0 %v127
    %451 = vmatprep.subr.mxu0 0.0
    %452 = vmatpush1.xpose.msra.mxu0 0.0
    %453 = vmatprep.subr.mxu0 0.0
    %454 = vmatpush1.xpose.msra.mxu0 0.0
    %455 = vmatprep.subr.mxu0 0.0
    %456 = vmatpush1.xpose.msra.mxu0 0.0
    %457 = vmatprep.subr.mxu0 0.0
    %458 = vmatpush1.xpose.msra.mxu0 0.0
    %459 = vmatprep.subr.mxu0 0.0
    %460 = vmatpush1.xpose.msra.mxu0 0.0
    %461 = vmatprep.subr.mxu0 0.0
    %462 = vmatpush1.xpose.msra.mxu0 0.0
    %463 = vmatprep.subr.mxu0 0.0
    %464 = vmatpush1.xpose.msra.mxu0 0.0
    %465 = vmatprep.subr.mxu0 0.0
    %466 = vmatpush1.xpose.msra.mxu0 0.0
    %467 = vmatprep.subr.mxu0 0.0
    %468 = vmatpush1.xpose.msra.mxu0 0.0
    %469 = vmatprep.subr.mxu0 0.0
    %470 = vmatpush1.xpose.msra.mxu0 0.0
    %471 = vmatprep.subr.mxu0 0.0
    %472 = vmatpush1.xpose.msra.mxu0 0.0
    %473 = vmatprep.subr.mxu0 0.0
    %474 = vmatpush1.xpose.msra.mxu0 0.0
    %475 = vmatprep.subr.mxu0 0.0
    %476 = vmatpush1.xpose.msra.mxu0 0.0
    %477 = vmatprep.subr.mxu0 0.0
    %478 = vmatpush1.xpose.msra.mxu0 0.0
    %479 = vmatprep.subr.mxu0 0.0
    %480 = vmatpush1.xpose.msra.mxu0 0.0
    %481 = vmatprep.subr.mxu0 0.0
    %482 = vmatpush1.xpose.msra.mxu0 0.0
    %483 = vmatprep.subr.mxu0 0.0
    %484 = vmatpush1.xpose.msra.mxu0 0.0
    %485 = vmatprep.subr.mxu0 0.0
    %486 = vmatpush1.xpose.msra.mxu0 0.0
    %487 = vmatprep.subr.mxu0 0.0
    %488 = vmatpush1.xpose.msra.mxu0 0.0
    %489 = vmatprep.subr.mxu0 0.0
    %490 = vmatpush1.xpose.msra.mxu0 0.0
    %491 = vmatprep.subr.mxu0 0.0
    %492 = vmatpush1.xpose.msra.mxu0 0.0
    %493 = vmatprep.subr.mxu0 0.0
    %494 = vmatpush1.xpose.msra.mxu0 0.0
    %495 = vmatprep.subr.mxu0 0.0
    %496 = vmatpush1.xpose.msra.mxu0 0.0
    %497 = vmatprep.subr.mxu0 0.0
    %498 = vmatpush1.xpose.msra.mxu0 0.0
    %499 = vmatprep.subr.mxu0 0.0
    %500 = vmatpush1.xpose.msra.mxu0 0.0
    %501 = vmatprep.subr.mxu0 0.0
    %502 = vmatpush1.xpose.msra.mxu0 0.0
    %503 = vmatprep.subr.mxu0 0.0
    %504 = vmatpush1.xpose.msra.mxu0 0.0
    %505 = vmatprep.subr.mxu0 0.0
    %506 = vmatpush1.xpose.msra.mxu0 0.0
    %507 = vmatprep.subr.mxu0 0.0
    %508 = vmatpush1.xpose.msra.mxu0 0.0
    %509 = vmatprep.subr.mxu0 0.0
    %510 = vmatpush1.xpose.msra.mxu0 0.0
    %511 = vmatprep.subr.mxu0 0.0
    %512 = vmatpush1.xpose.msra.mxu0 0.0
    %513 = vmatprep.mubr.f32.mxu0 0.0
    %514 = vmatmul.mubr.f32.gmra.mrb[0].mxu0 %v447
    %v515 = vpop.f32.mrb[0].mxu0
    %v516 = vadd.f32 0.0, %v515
    %v517 = vpop.f32.mrb[0].mxu0
    %518 = vdwg.mxu0
    %v519 = vsel %vm199, %v516, -inf
    %520 = vmax.xlane.f32.xlu0 %v519
    %v521 = vpop.xlane.xlu0 %520
    %v522 = vsub.f32 %v516, %v521
    %v523 = vmul.f32 %v522, 1.442695
    %v524 = vpow.pop %v523
    %v525 = vsel %vm199, %v524, 0.0
    %526 = vadd.xlane.f32.xlu0 %v525
    %v527 = vpop.xlane.xlu0 %526
    %v528 = vrcp.pop %v527
    %v529 = vmul.f32 %v524, %v528
    %v531 = vsel %vm199, %v529, 0
    %533 = vmatprep.subr.mxu0 0.0
    %534 = vmatpush1.msra.mxu0 %v212
    %535 = vmatprep.subr.mxu0 0.0
    %536 = vmatpush1.msra.mxu0 0.0
    %537 = vmatprep.subr.mxu0 0.0
    %538 = vmatpush1.msra.mxu0 0.0
    %539 = vmatprep.subr.mxu0 0.0
    %540 = vmatpush1.msra.mxu0 0.0
    %541 = vmatprep.subr.mxu0 0.0
    %542 = vmatpush1.msra.mxu0 0.0
    %543 = vmatprep.subr.mxu0 0.0
    %544 = vmatpush1.msra.mxu0 0.0
    %545 = vmatprep.subr.mxu0 0.0
    %546 = vmatpush1.msra.mxu0 0.0
    %547 = vmatprep.subr.mxu0 0.0
    %548 = vmatpush1.msra.mxu0 0.0
    %549 = vmatprep.subr.mxu0 0.0
    %550 = vmatpush1.msra.mxu0 0.0
    %551 = vmatprep.subr.mxu0 0.0
    %552 = vmatpush1.msra.mxu0 0.0
    %553 = vmatprep.subr.mxu0 0.0
    %554 = vmatpush1.msra.mxu0 0.0
    %555 = vmatprep.subr.mxu0 0.0
    %556 = vmatpush1.msra.mxu0 0.0
    %557 = vmatprep.subr.mxu0 0.0
    %558 = vmatpush1.msra.mxu0 0.0
    %559 = vmatprep.subr.mxu0 0.0
    %560 = vmatpush1.msra.mxu0 0.0
    %561 = vmatprep.subr.mxu0 0.0
    %562 = vmatpush1.msra.mxu0 0.0
    %563 = vmatprep.subr.mxu0 0.0
    %564 = vmatpush1.msra.mxu0 0.0
    %565 = vmatprep.subr.mxu0 0.0
    %566 = vmatpush1.msra.mxu0 0.0
    %567 = vmatprep.subr.mxu0 0.0
    %568 = vmatpush1.msra.mxu0 0.0
    %569 = vmatprep.subr.mxu0 0.0
    %570 = vmatpush1.msra.mxu0 0.0
    %571 = vmatprep.subr.mxu0 0.0
    %572 = vmatpush1.msra.mxu0 0.0
    %573 = vmatprep.subr.mxu0 0.0
    %574 = vmatpush1.msra.mxu0 0.0
    %575 = vmatprep.subr.mxu0 0.0
    %576 = vmatpush1.msra.mxu0 0.0
    %577 = vmatprep.subr.mxu0 0.0
    %578 = vmatpush1.msra.mxu0 0.0
    %579 = vmatprep.subr.mxu0 0.0
    %580 = vmatpush1.msra.mxu0 0.0
    %581 = vmatprep.subr.mxu0 0.0
    %582 = vmatpush1.msra.mxu0 0.0
    %583 = vmatprep.subr.mxu0 0.0
    %584 = vmatpush1.msra.mxu0 0.0
    %585 = vmatprep.subr.mxu0 0.0
    %586 = vmatpush1.msra.mxu0 0.0
    %587 = vmatprep.subr.mxu0 0.0
    %588 = vmatpush1.msra.mxu0 0.0
    %589 = vmatprep.subr.mxu0 0.0
    %590 = vmatpush1.msra.mxu0 0.0
    %591 = vmatprep.subr.mxu0 0.0
    %592 = vmatpush1.msra.mxu0 0.0
    %593 = vmatprep.subr.mxu0 0.0
    %594 = vmatpush1.msra.mxu0 0.0
    %595 = vmatprep.subr.mxu0 0.0
    %596 = vmatpush1.msra.mxu0 0.0
    %597 = vmatprep.mubr.f32.mxu0 0.0
    %598 = vmatmul.mubr.f32.gmra.mrb[0].mxu0 %v531
    %v599 = vpop.f32.mrb[0].mxu0
    %v600 = vadd.f32 0.0, %v599
    %v601 = vpop.f32.mrb[0].mxu0
    %602 = vdwg.mxu0
    %603 = vrot.lane.b32.xlu0 %v118, 32
    %v604 = vpop.permute.xlu0 %603
    %v605 = vsel %vm122, %v604, 0
    %607 = vmatprep.subr.mxu0 0.0
    %608 = vmatpush1.xpose.msra.mxu0 %v127
    %609 = vmatprep.subr.mxu0 0.0
    %610 = vmatpush1.xpose.msra.mxu0 0.0
    %611 = vmatprep.subr.mxu0 0.0
    %612 = vmatpush1.xpose.msra.mxu0 0.0
    %613 = vmatprep.subr.mxu0 0.0
    %614 = vmatpush1.xpose.msra.mxu0 0.0
    %615 = vmatprep.subr.mxu0 0.0
    %616 = vmatpush1.xpose.msra.mxu0 0.0
    %617 = vmatprep.subr.mxu0 0.0
    %618 = vmatpush1.xpose.msra.mxu0 0.0
    %619 = vmatprep.subr.mxu0 0.0
    %620 = vmatpush1.xpose.msra.mxu0 0.0
    %621 = vmatprep.subr.mxu0 0.0
    %622 = vmatpush1.xpose.msra.mxu0 0.0
    %623 = vmatprep.subr.mxu0 0.0
    %624 = vmatpush1.xpose.msra.mxu0 0.0
    %625 = vmatprep.subr.mxu0 0.0
    %626 = vmatpush1.xpose.msra.mxu0 0.0
    %627 = vmatprep.subr.mxu0 0.0
    %628 = vmatpush1.xpose.msra.mxu0 0.0
    %629 = vmatprep.subr.mxu0 0.0
    %630 = vmatpush1.xpose.msra.mxu0 0.0
    %631 = vmatprep.subr.mxu0 0.0
    %632 = vmatpush1.xpose.msra.mxu0 0.0
    %633 = vmatprep.subr.mxu0 0.0
    %634 = vmatpush1.xpose.msra.mxu0 0.0
    %635 = vmatprep.subr.mxu0 0.0
    %636 = vmatpush1.xpose.msra.mxu0 0.0
    %637 = vmatprep.subr.mxu0 0.0
    %638 = vmatpush1.xpose.msra.mxu0 0.0
    %639 = vmatprep.subr.mxu0 0.0
    %640 = vmatpush1.xpose.msra.mxu0 0.0
    %641 = vmatprep.subr.mxu0 0.0
    %642 = vmatpush1.xpose.msra.mxu0 0.0
    %643 = vmatprep.subr.mxu0 0.0
    %644 = vmatpush1.xpose.msra.mxu0 0.0
    %645 = vmatprep.subr.mxu0 0.0
    %646 = vmatpush1.xpose.msra.mxu0 0.0
    %647 = vmatprep.subr.mxu0 0.0
    %648 = vmatpush1.xpose.msra.mxu0 0.0
    %649 = vmatprep.subr.mxu0 0.0
    %650 = vmatpush1.xpose.msra.mxu0 0.0
    %651 = vmatprep.subr.mxu0 0.0
    %652 = vmatpush1.xpose.msra.mxu0 0.0
    %653 = vmatprep.subr.mxu0 0.0
    %654 = vmatpush1.xpose.msra.mxu0 0.0
    %655 = vmatprep.subr.mxu0 0.0
    %656 = vmatpush1.xpose.msra.mxu0 0.0
    %657 = vmatprep.subr.mxu0 0.0
    %658 = vmatpush1.xpose.msra.mxu0 0.0
    %659 = vmatprep.subr.mxu0 0.0
    %660 = vmatpush1.xpose.msra.mxu0 0.0
    %661 = vmatprep.subr.mxu0 0.0
    %662 = vmatpush1.xpose.msra.mxu0 0.0
    %663 = vmatprep.subr.mxu0 0.0
    %664 = vmatpush1.xpose.msra.mxu0 0.0
    %665 = vmatprep.subr.mxu0 0.0
    %666 = vmatpush1.xpose.msra.mxu0 0.0
    %667 = vmatprep.subr.mxu0 0.0
    %668 = vmatpush1.xpose.msra.mxu0 0.0
    %669 = vmatprep.subr.mxu0 0.0
    %670 = vmatpush1.xpose.msra.mxu0 0.0
    %671 = vmatprep.mubr.f32.mxu0 0.0
    %672 = vmatmul.mubr.f32.gmra.mrb[0].mxu0 %v605
    %v673 = vpop.f32.mrb[0].mxu0
    %v674 = vadd.f32 0.0, %v673
    %v675 = vpop.f32.mrb[0].mxu0
    %676 = vdwg.mxu0
    %v677 = vsel %vm199, %v674, -inf
    %678 = vmax.xlane.f32.xlu0 %v677
    %v679 = vpop.xlane.xlu0 %678
    %v680 = vsub.f32 %v674, %v679
    %v681 = vmul.f32 %v680, 1.442695
    %v682 = vpow.pop %v681
    %v683 = vsel %vm199, %v682, 0.0
    %684 = vadd.xlane.f32.xlu0 %v683
    %v685 = vpop.xlane.xlu0 %684
    %v686 = vrcp.pop %v685
    %v687 = vmul.f32 %v682, %v686
    %v689 = vsel %vm199, %v687, 0
    %691 = vmatprep.subr.mxu0 0.0
    %692 = vmatpush1.msra.mxu0 %v212
    %693 = vmatprep.subr.mxu0 0.0
    %694 = vmatpush1.msra.mxu0 0.0
    %695 = vmatprep.subr.mxu0 0.0
    %696 = vmatpush1.msra.mxu0 0.0
    %697 = vmatprep.subr.mxu0 0.0
    %698 = vmatpush1.msra.mxu0 0.0
    %699 = vmatprep.subr.mxu0 0.0
    %700 = vmatpush1.msra.mxu0 0.0
    %701 = vmatprep.subr.mxu0 0.0
    %702 = vmatpush1.msra.mxu0 0.0
    %703 = vmatprep.subr.mxu0 0.0
    %704 = vmatpush1.msra.mxu0 0.0
    %705 = vmatprep.subr.mxu0 0.0
    %706 = vmatpush1.msra.mxu0 0.0
    %707 = vmatprep.subr.mxu0 0.0
    %708 = vmatpush1.msra.mxu0 0.0
    %709 = vmatprep.subr.mxu0 0.0
    %710 = vmatpush1.msra.mxu0 0.0
    %711 = vmatprep.subr.mxu0 0.0
    %712 = vmatpush1.msra.mxu0 0.0
    %713 = vmatprep.subr.mxu0 0.0
    %714 = vmatpush1.msra.mxu0 0.0
    %715 = vmatprep.subr.mxu0 0.0
    %716 = vmatpush1.msra.mxu0 0.0
    %717 = vmatprep.subr.mxu0 0.0
    %718 = vmatpush1.msra.mxu0 0.0
    %719 = vmatprep.subr.mxu0 0.0
    %720 = vmatpush1.msra.mxu0 0.0
    %721 = vmatprep.subr.mxu0 0.0
    %722 = vmatpush1.msra.mxu0 0.0
    %723 = vmatprep.subr.mxu0 0.0
    %724 = vmatpush1.msra.mxu0 0.0
    %725 = vmatprep.subr.mxu0 0.0
    %726 = vmatpush1.msra.mxu0 0.0
    %727 = vmatprep.subr.mxu0 0.0
    %728 = vmatpush1.msra.mxu0 0.0
    %729 = vmatprep.subr.mxu0 0.0
    %730 = vmatpush1.msra.mxu0 0.0
    %731 = vmatprep.subr.mxu0 0.0
    %732 = vmatpush1.msra.mxu0 0.0
    %733 = vmatprep.subr.mxu0 0.0
    %734 = vmatpush1.msra.mxu0 0.0
    %735 = vmatprep.subr.mxu0 0.0
    %736 = vmatpush1.msra.mxu0 0.0
    %737 = vmatprep.subr.mxu0 0.0
    %738 = vmatpush1.msra.mxu0 0.0
    %739 = vmatprep.subr.mxu0 0.0
    %740 = vmatpush1.msra.mxu0 0.0
    %741 = vmatprep.subr.mxu0 0.0
    %742 = vmatpush1.msra.mxu0 0.0
    %743 = vmatprep.subr.mxu0 0.0
    %744 = vmatpush1.msra.mxu0 0.0
    %745 = vmatprep.subr.mxu0 0.0
    %746 = vmatpush1.msra.mxu0 0.0
    %747 = vmatprep.subr.mxu0 0.0
    %748 = vmatpush1.msra.mxu0 0.0
    %749 = vmatprep.subr.mxu0 0.0
    %750 = vmatpush1.msra.mxu0 0.0
    %751 = vmatprep.subr.mxu0 0.0
    %752 = vmatpush1.msra.mxu0 0.0
    %753 = vmatprep.subr.mxu0 0.0
    %754 = vmatpush1.msra.mxu0 0.0
    %755 = vmatprep.mubr.f32.mxu0 0.0
    %756 = vmatmul.mubr.f32.gmra.mrb[0].mxu0 %v689
    %v757 = vpop.f32.mrb[0].mxu0
    %v758 = vadd.f32 0.0, %v757
    %v759 = vpop.f32.mrb[0].mxu0
    %760 = vdwg.mxu0
    %762 = vrot.lane.b32.xlu0 %v442, 32
    %v763 = vpop.permute.xlu0 %762
    %766 = vrot.lane.b32.xlu0 %v600, 64
    %v767 = vpop.permute.xlu0 %766
    %770 = vrot.lane.b32.xlu0 %v758, 96
    %v771 = vpop.permute.xlu0 %770
    %v773 = vsel %vm122, %v284, %v763
    %v774 = vsel %vm47, %v773, %v767
    %vm775 = vcmask 785408
    %v776 = vsel %vm775, %v774, %v771
    %v777 = vld [vmem:[%s3] sm:$0xff]
    %v778 = vld [vmem:[%s3 + $0x8] sm:$0xff]
    %v779 = vld [vmem:[%s3 + $0x10] sm:$0xff]
    %v780 = vld [vmem:[%s3 + $0x18] sm:$0xff]
    %v781 = vld [vmem:[%s3 + $0x20] sm:$0xff]
    %v782 = vld [vmem:[%s3 + $0x28] sm:$0xff]
    %v783 = vld [vmem:[%s3 + $0x30] sm:$0xff]
    %v784 = vld [vmem:[%s3 + $0x38] sm:$0xff]
    %v785 = vld [vmem:[%s3 + $0x40] sm:$0xff]
    %v786 = vld [vmem:[%s3 + $0x48] sm:$0xff]
    %v787 = vld [vmem:[%s3 + $0x50] sm:$0xff]
    %v788 = vld [vmem:[%s3 + $0x58] sm:$0xff]
    %v789 = vld [vmem:[%s3 + $0x60] sm:$0xff]
    %v790 = vld [vmem:[%s3 + $0x68] sm:$0xff]
    %v791 = vld [vmem:[%s3 + $0x70] sm:$0xff]
    %v792 = vld [vmem:[%s3 + $0x78] sm:$0xff]
    %793 = vmatprep.subr.mxu0 0.0
    %794 = vmatpush1.msra.mxu0 %v777
    %795 = vmatprep.subr.mxu0 0.0
    %796 = vmatpush1.msra.mxu0 %v778
    %797 = vmatprep.subr.mxu0 0.0
    %798 = vmatpush1.msra.mxu0 %v779
    %799 = vmatprep.subr.mxu0 0.0
    %800 = vmatpush1.msra.mxu0 %v780
    %801 = vmatprep.subr.mxu0 0.0
    %802 = vmatpush1.msra.mxu0 %v781
    %803 = vmatprep.subr.mxu0 0.0
    %804 = vmatpush1.msra.mxu0 %v782
    %805 = vmatprep.subr.mxu0 0.0
    %806 = vmatpush1.msra.mxu0 %v783
    %807 = vmatprep.subr.mxu0 0.0
    %808 = vmatpush1.msra.mxu0 %v784
    %809 = vmatprep.subr.mxu0 0.0
    %810 = vmatpush1.msra.mxu0 %v785
    %811 = vmatprep.subr.mxu0 0.0
    %812 = vmatpush1.msra.mxu0 %v786
    %813 = vmatprep.subr.mxu0 0.0
    %814 = vmatpush1.msra.mxu0 %v787
    %815 = vmatprep.subr.mxu0 0.0
    %816 = vmatpush1.msra.mxu0 %v788
    %817 = vmatprep.subr.mxu0 0.0
    %818 = vmatpush1.msra.mxu0 %v789
    %819 = vmatprep.subr.mxu0 0.0
    %820 = vmatpush1.msra.mxu0 %v790
    %821 = vmatprep.subr.mxu0 0.0
    %822 = vmatpush1.msra.mxu0 %v791
    %823 = vmatprep.subr.mxu0 0.0
    %824 = vmatpush1.msra.mxu0 %v792
    %825 = vmatprep.subr.mxu0 0.0
    %826 = vmatpush1.msra.mxu0 0.0
    %827 = vmatprep.subr.mxu0 0.0
    %828 = vmatpush1.msra.mxu0 0.0
    %829 = vmatprep.subr.mxu0 0.0
    %830 = vmatpush1.msra.mxu0 0.0
    %831 = vmatprep.subr.mxu0 0.0
    %832 = vmatpush1.msra.mxu0 0.0
    %833 = vmatprep.subr.mxu0 0.0
    %834 = vmatpush1.msra.mxu0 0.0
    %835 = vmatprep.subr.mxu0 0.0
    %836 = vmatpush1.msra.mxu0 0.0
    %837 = vmatprep.subr.mxu0 0.0
    %838 = vmatpush1.msra.mxu0 0.0
    %839 = vmatprep.subr.mxu0 0.0
    %840 = vmatpush1.msra.mxu0 0.0
    %841 = vmatprep.subr.mxu0 0.0
    %842 = vmatpush1.msra.mxu0 0.0
    %843 = vmatprep.subr.mxu0 0.0
    %844 = vmatpush1.msra.mxu0 0.0
    %845 = vmatprep.subr.mxu0 0.0
    %846 = vmatpush1.msra.mxu0 0.0
    %847 = vmatprep.subr.mxu0 0.0
    %848 = vmatpush1.msra.mxu0 0.0
    %849 = vmatprep.subr.mxu0 0.0
    %850 = vmatpush1.msra.mxu0 0.0
    %851 = vmatprep.subr.mxu0 0.0
    %852 = vmatpush1.msra.mxu0 0.0
    %853 = vmatprep.subr.mxu0 0.0
    %854 = vmatpush1.msra.mxu0 0.0
    %855 = vmatprep.subr.mxu0 0.0
    %856 = vmatpush1.msra.mxu0 0.0
    %857 = vmatprep.mubr.f32.mxu0 0.0
    %858 = vmatmul.mubr.f32.gmra.mrb[0].mxu0 %v776
    %v859 = vpop.f32.mrb[0].mxu0
    %v860 = vadd.f32 0.0, %v859
    %v861 = vpop.f32.mrb[0].mxu0
    %862 = vdwg.mxu0
    %863 = vst.msk [vmem:[#allocation2] sm:$0xff] %vm122, %v860
    // Predicated region
    $region18: #{tpu_custom_call.1} parent=1 // pred_check
      _
    $region19: #{tpu_custom_call.1} parent=1 // pred_check_branch
      %865 = sbr.rel (0) target = $region21
    $region20: #{tpu_custom_call.1} parent=1 // pred_region
      %s867 = ssub.s32 128, 128
      %868 = vsyncadd [#allocation3], %s867
      %s870 = sshll.u32 [#allocation2], 4
      %s871 = int_to_ptr.vmem [resolvable:$true] %s870
      %873 = dma.vmem_to_hbm [thread:$0]  %s871, 128, %s4, [#allocation3]
    $region21: #{tpu_custom_call.1} parent=1 // pred_fallthru
      _
    // Predicated region
    $region22: #{tpu_custom_call.1} parent=1 // pred_check
      _
    $region23: #{tpu_custom_call.1} parent=1 // pred_check_branch
      %875 = sbr.rel (0) target = $region25
    $region24: #{tpu_custom_call.1} parent=1 // pred_region
      %876 = dma.done [#allocation3], 128
    $region25: #{tpu_custom_call.1} parent=1 // pred_fallthru
      _
    %877 = vsyncpa [#allocation3], 1

</llo_original>
